<compile_context>
chip_gen: v5e
topology: v5e:2x2
jax: 0.10.0
libtpu: 0.0.40
codegen_flags: <defaults>
</compile_context>

<pallas_src>
import jax
import jax.numpy as jnp
from jax import lax
from jax.experimental import pallas as pl
from jax.experimental.pallas import tpu as pltpu

# -----------------------------------------------------------------------------
# Small synthetic config (consistent with PV_RCNN.proposal forward semantics)
# -----------------------------------------------------------------------------
B = 2               # batch size
N_POINTS = 128      # points per sample
NUM_KEYPOINTS = 16  # cfg.NUM_KEYPOINTS
N_VOXELS = 64       # total (sparse) voxels across the batch
MAX_PTS_PER_VOX = 5
C_RAW = 4           # raw point feature dim (x, y, z, intensity)
NY, NX = 16, 16     # BEV grid
C_BEV = 32          # BEV feature channels (stand-in for 128 in the real model)
NUM_CLASSES = 4
NUM_YAW = 2
BOX_DOF = 7

N_CLS = NUM_CLASSES * NUM_YAW                    # 8
N_REG = (NUM_CLASSES - 1) * NUM_YAW * BOX_DOF    # 42
N_HEAD = N_CLS + N_REG                           # 50
N_HEAD_PAD = 128                                 # lane-dense padded head width
TILE_M = 256                                     # BEV/head row tile


def _round_up(x, m):
    return (x + m - 1) // m * m


# -----------------------------------------------------------------------------
# Kernel 1: furthest point sampling  (sample_keypoints)
# -----------------------------------------------------------------------------
def fps_kernel(pts_ref, kp_ref):
    # pts_ref: (1, 3, N) coordinate-major (coords on sublanes, points on lanes).
    # kp_ref : (1, 3, K) keypoints (coordinate-major; transposed back in wrapper).
    n = pts_ref.shape[2]
    k_total = kp_ref.shape[2]

    p = pts_ref[0]                                           # (3, N)
    lane = lax.broadcasted_iota(jnp.int32, (1, n), 1)        # (1, N)
    col = lax.broadcasted_iota(jnp.int32, (3, k_total), 1)   # (3, K)

    # Packed argmax key = [distance bits (high) | inverted lane index (low)].
    # Distances are >= 0, so their f32 bit pattern is order-preserving as int32;
    # the low lane_bits of the mantissa are sacrificed for the tie-break index.
    lane_bits = max(1, (n - 1).bit_length())
    lane_mask = (1 << lane_bits) - 1
    high_mask = jnp.int32(~lane_mask)
    inv_lane = (n - 1) - lane                                # (1, N), higher = earlier lane

    # Loop-invariant coordinate rows (keep the distance on the VPU).
    px = p[0:1, :]
    py = p[1:2, :]
    pz = p[2:3, :]

    # pointnet2 semantics: first keypoint is point 0, distances init to 1e10.
    kxyz0 = p[:, 0:1]                                        # (3, 1)
    kp0 = jnp.where(col == 0, kxyz0, 0.0)                    # (3, K)
    mind0 = jnp.full((1, n), 1e10, dtype=jnp.float32)

    def body(k, carry):
        mind, kxyz, kp_acc = carry
        # squared distance to the latest keypoint (VPU only, no sublane reduce)
        dx = px - kxyz[0:1, :]
        dy = py - kxyz[1:2, :]
        dz = pz - kxyz[2:3, :]
        d = dx * dx + dy * dy + dz * dz                      # (1, N)
        mind = jnp.minimum(mind, d)
        # single cross-lane reduce gives argmax with first-index tie-break
        key = (pltpu.bitcast(mind, jnp.int32) & high_mask) | inv_lane
        best = jnp.max(key)
        idx = (n - 1) - (best & lane_mask)
        sel = lane == idx                                    # (1, N)
        # single cross-lane reduce gathers all 3 coords at once
        kxyz_new = jnp.sum(jnp.where(sel, p, 0.0), axis=1, keepdims=True)  # (3, 1)
        kp_acc = jnp.where(col == k, kxyz_new, kp_acc)       # in-register update
        return (mind, kxyz_new, kp_acc)

    _, _, kp_acc = lax.fori_loop(1, k_total, body, (mind0, kxyz0, kp0))
    kp_ref[0] = kp_acc


def sample_keypoints(points):
    """points: (B, N, >=3) float32 -> keypoints (B, K, 3)."""
    pts = jnp.transpose(points[..., :3], (0, 2, 1)).astype(jnp.float32)  # (B, 3, N)
    b, _, n = pts.shape
    kp = pl.pallas_call(
        fps_kernel,
        out_shape=jax.ShapeDtypeStruct((b, 3, NUM_KEYPOINTS), jnp.float32),
        grid=(b,),
        in_specs=[pl.BlockSpec((1, 3, n), lambda i: (i, 0, 0))],
        out_specs=pl.BlockSpec((1, 3, NUM_KEYPOINTS), lambda i: (i, 0, 0)),
        compiler_params=pltpu.CompilerParams(dimension_semantics=("parallel",)),
    )(pts)
    return jnp.transpose(kp, (0, 2, 1))  # (B, K, 3)


# -----------------------------------------------------------------------------
# VoxelFeatureExtractor: masked mean of points within each voxel (wrapper jnp)
# -----------------------------------------------------------------------------
def voxel_feature_extractor(features, occupancy):
    """features: (Nv, Kp, C), occupancy: (Nv,) -> (Nv, C) masked mean (exact divide).

    Done in plain jnp per perf review: at (64, 5, 4) a dedicated pallas_call is pure
    launch overhead plus an HBM round-trip of the intermediate.
    """
    feats = features.astype(jnp.float32)
    occ = occupancy.astype(jnp.float32)
    kp = feats.shape[1]
    slot = jnp.arange(kp, dtype=jnp.float32)[None, :, None]
    mask = (slot < occ[:, None, None]).astype(jnp.float32)
    summed = jnp.sum(feats * mask, axis=1)                   # (Nv, C)
    return summed / jnp.maximum(occ, 1.0)[:, None]


# -----------------------------------------------------------------------------
# Kernel 2: fused dense BEV scatter (Nv-chunked) + bias/ReLU + proposal head
# -----------------------------------------------------------------------------
def bev_head_kernel(pix_ref, feat_ref, bp_ref, wh_ref, bh_ref, out_ref, acc_ref):
    # pix_ref : (1, TK) int32 global pixel index chunk (batch folded in, pad = -1)
    # feat_ref: (TK, C_BEV) bf16 voxel features already projected by w_proj
    # bp_ref  : (1, C_BEV) f32, wh_ref: (C_BEV, N_HEAD_PAD) bf16, bh_ref: (1, N_HEAD_PAD)
    # out_ref : (TILE_M, N_HEAD_PAD) f32 — lane-dense padded cls|reg output rows
    # acc_ref : (TILE_M, C_BEV) f32 scatter accumulator (VMEM scratch)
    k = pl.program_id(1)

    @pl.when(k == 0)
    def _():
        acc_ref[...] = jnp.zeros_like(acc_ref)

    tile_m = out_ref.shape[0]
    row0 = pl.program_id(0) * tile_m
    rows = lax.broadcasted_iota(jnp.int32, (tile_m, 1), 0) + row0        # (tile_m, 1)
    onehot = (pix_ref[...] == rows).astype(jnp.bfloat16)                 # (tile_m, TK)
    acc_ref[...] += jnp.dot(onehot, feat_ref[...],
                            preferred_element_type=jnp.float32)          # scatter-add

    @pl.when(k == pl.num_programs(1) - 1)
    def _():
        bev = jnp.maximum(acc_ref[...] + bp_ref[...], 0.0)
        out_ref[...] = jnp.dot(bev.astype(jnp.bfloat16), wh_ref[...],
                               preferred_element_type=jnp.float32) + bh_ref[...]


def bev_proposal(vfeat, coordinates, batch_size, params):
    """vfeat: (Nv, C_RAW), coordinates: (Nv, 4) [b, z, y, x] -> (P_cls, P_reg)."""
    nv, _ = vfeat.shape
    p = NY * NX
    m = batch_size * p

    # Fold w_proj into the per-voxel features (exact by associativity; bias + ReLU
    # are applied after the scatter inside the kernel).  Tiny (Nv x C_RAW x C_BEV).
    feat_proj = (vfeat @ params["w_proj"]).astype(jnp.bfloat16)           # (Nv, C_BEV)

    # Global pixel index folds the batch into a single scatter.
    pix_global = (coordinates[:, 0] * p + coordinates[:, 2] * NX
                  + coordinates[:, 3]).astype(jnp.int32)                  # (Nv,)

    # Pad the voxel axis to an MXU-sized chunk (128 everywhere; 256 when Nv allows,
    # matching the v6e/v7x 256-deep MXU).  Padded voxels: pixel=-1, features=0.
    nv_pad = _round_up(nv, 128)
    tk = 256 if (nv_pad % 256 == 0 and nv_pad >= 256) else 128
    pad = nv_pad - nv
    pix_pad = jnp.pad(pix_global, (0, pad), constant_values=-1).reshape(1, nv_pad)
    feat_pad = jnp.pad(feat_proj, ((0, pad), (0, 0)))

    bp = params["b_proj"].reshape(1, C_BEV).astype(jnp.float32)
    # fuse cls + reg heads into one weight, padded to 128 lanes (lane-dense store)
    w_head = jnp.concatenate(
        [params["w_cls"], params["w_reg"],
         jnp.zeros((C_BEV, N_HEAD_PAD - N_HEAD), jnp.float32)], axis=1)
    b_head = jnp.concatenate(
        [params["b_cls"], params["b_reg"],
         jnp.zeros((N_HEAD_PAD - N_HEAD,), jnp.float32)]).reshape(1, N_HEAD_PAD)

    tile_m = min(TILE_M, m)
    assert m % tile_m == 0 and nv_pad % tk == 0
    grid = (m // tile_m, nv_pad // tk)   # M tiles parallel (>=2 feeds v7x's 2 TCs)

    flops = 2 * m * C_BEV * (nv_pad + N_HEAD_PAD)
    bytes_accessed = (grid[0] * (4 * nv_pad + 2 * nv_pad * C_BEV)
                      + 4 * C_BEV + 2 * C_BEV * N_HEAD_PAD + 4 * N_HEAD_PAD
                      + 4 * m * N_HEAD_PAD)

    head = pl.pallas_call(
        bev_head_kernel,
        out_shape=jax.ShapeDtypeStruct((m, N_HEAD_PAD), jnp.float32),
        grid=grid,
        in_specs=[
            pl.BlockSpec((1, tk), lambda i, k: (0, k)),
            pl.BlockSpec((tk, C_BEV), lambda i, k: (k, 0)),
            pl.BlockSpec((1, C_BEV), lambda i, k: (0, 0)),
            pl.BlockSpec((C_BEV, N_HEAD_PAD), lambda i, k: (0, 0)),
            pl.BlockSpec((1, N_HEAD_PAD), lambda i, k: (0, 0)),
        ],
        out_specs=pl.BlockSpec((tile_m, N_HEAD_PAD), lambda i, k: (i, 0)),
        scratch_shapes=[pltpu.VMEM((tile_m, C_BEV), jnp.float32)],
        compiler_params=pltpu.CompilerParams(
            dimension_semantics=("parallel", "arbitrary"),
            vmem_limit_bytes=32 * 1024 * 1024),
        cost_estimate=pl.CostEstimate(
            flops=flops, transcendentals=0, bytes_accessed=bytes_accessed),
    )(pix_pad, feat_pad, bp, w_head.astype(jnp.bfloat16), b_head)

    # Split fused head output and restore the exact PyTorch NCHW-based layouts.
    cls_flat = head[:, :N_CLS]
    reg_flat = head[:, N_CLS:N_HEAD]
    b = batch_size
    cls_nchw = jnp.transpose(cls_flat.reshape(b, NY, NX, N_CLS), (0, 3, 1, 2))
    reg_nchw = jnp.transpose(reg_flat.reshape(b, NY, NX, N_REG), (0, 3, 1, 2))
    p_cls = cls_nchw.reshape(b, NUM_CLASSES, NUM_YAW, NY, NX)
    p_reg = reg_nchw.reshape(b, NUM_CLASSES - 1, BOX_DOF, NUM_YAW, NY, NX)
    p_reg = jnp.transpose(p_reg, (0, 1, 3, 4, 5, 2))
    return p_cls, p_reg


# -----------------------------------------------------------------------------
# PV_RCNN.forward == PV_RCNN.proposal
# -----------------------------------------------------------------------------
def pv_rcnn_forward(item, params):
    keypoints = sample_keypoints(item["points"])
    vfeat = voxel_feature_extractor(item["features"], item["occupancy"])
    p_cls, p_reg = bev_proposal(vfeat, item["coordinates"], item["batch_size"], params)
    out = dict(item)
    out.update(keypoints=keypoints, P_cls=p_cls, P_reg=p_reg)
    return out


if __name__ == "__main__":
    key = jax.random.PRNGKey(0)
    ks = jax.random.split(key, 10)

    points = jax.random.uniform(ks[0], (B, N_POINTS, 4), jnp.float32, -10.0, 10.0)
    features = jax.random.normal(ks[1], (N_VOXELS, MAX_PTS_PER_VOX, C_RAW), jnp.float32)
    occupancy = jax.random.randint(ks[2], (N_VOXELS,), 1, MAX_PTS_PER_VOX + 1)
    coords_b = jax.random.randint(ks[3], (N_VOXELS,), 0, B)
    coords_z = jax.random.randint(ks[4], (N_VOXELS,), 0, 2)
    coords_y = jax.random.randint(ks[5], (N_VOXELS,), 0, NY)
    coords_x = jax.random.randint(ks[6], (N_VOXELS,), 0, NX)
    coordinates = jnp.stack([coords_b, coords_z, coords_y, coords_x], axis=-1)

    # Deterministic synthetic parameters (conv weights stored as (Cin, Cout),
    # i.e. transposed 1x1-conv kernels).
    params = dict(
        w_proj=0.1 * jax.random.normal(ks[7], (C_RAW, C_BEV), jnp.float32),
        b_proj=0.01 * jnp.arange(C_BEV, dtype=jnp.float32),
        w_cls=0.1 * jax.random.normal(ks[8], (C_BEV, N_CLS), jnp.float32),
        b_cls=0.01 * jnp.arange(N_CLS, dtype=jnp.float32),
        w_reg=0.1 * jax.random.normal(ks[9], (C_BEV, N_REG), jnp.float32),
        b_reg=jnp.zeros((N_REG,), jnp.float32),
    )

    item = dict(
        points=points,
        features=features,
        occupancy=occupancy,
        coordinates=coordinates,
        batch_size=B,
    )

    out = pv_rcnn_forward(item, params)
    jax.block_until_ready((out["keypoints"], out["P_cls"], out["P_reg"]))

    assert out["keypoints"].shape == (B, NUM_KEYPOINTS, 3)
    assert out["P_cls"].shape == (B, NUM_CLASSES, NUM_YAW, NY, NX)
    assert out["P_reg"].shape == (B, NUM_CLASSES - 1, NUM_YAW, NY, NX, BOX_DOF)
    assert bool(jnp.all(jnp.isfinite(out["P_cls"])))
    assert bool(jnp.all(jnp.isfinite(out["P_reg"])))
    print("KERNEL_OK")
</pallas_src>

<mosaic_0001>
module attributes {stable_mosaic.version = 11 : i64} {
  func.func @fps_kernel(%arg0: i32, %arg1: memref<1x3x128xf32, #tpu.memory_space<vmem>>, %arg2: memref<1x3x16xf32, #tpu.memory_space<vmem>>) attributes {dimension_semantics = [#tpu.dimension_semantics<parallel>], iteration_bounds = array<i64: 2>, scalar_prefetch = 0 : i64, scratch_operands = 0 : i64, tpu.core_type = #tpu.core_type<tc>, window_params = [{transform_indices = @transform_0, window_bounds = array<i64: 1, 3, 128>}, {transform_indices = @transform_1, window_bounds = array<i64: 1, 3, 16>}]} {
    %c0 = arith.constant 0 : index
    %c0_0 = arith.constant 0 : index
    %c0_1 = arith.constant 0 : index
    %0 = vector.load %arg1[%c0, %c0_0, %c0_1] : memref<1x3x128xf32, #tpu.memory_space<vmem>>, vector<1x3x128xf32>
    %1 = vector.shape_cast %0 : vector<1x3x128xf32> to vector<3x128xf32>
    %2 = tpu.iota {dimensions = array<i32: 1>} : vector<1x128xi32>
    %3 = tpu.iota {dimensions = array<i32: 1>} : vector<3x16xi32>
    %c127_i32 = arith.constant 127 : i32
    %4 = vector.broadcast %c127_i32 : i32 to vector<1x128xi32>
    %5 = arith.subi %4, %2 : vector<1x128xi32>
    %6 = vector.extract_strided_slice %1 {offsets = [0, 0], sizes = [1, 128], strides = [1, 1]} : vector<3x128xf32> to vector<1x128xf32>
    %7 = vector.extract_strided_slice %1 {offsets = [1, 0], sizes = [1, 128], strides = [1, 1]} : vector<3x128xf32> to vector<1x128xf32>
    %8 = vector.extract_strided_slice %1 {offsets = [2, 0], sizes = [1, 128], strides = [1, 1]} : vector<3x128xf32> to vector<1x128xf32>
    %9 = vector.extract_strided_slice %1 {offsets = [0, 0], sizes = [3, 1], strides = [1, 1]} : vector<3x128xf32> to vector<3x1xf32>
    %c0_i32 = arith.constant 0 : i32
    %10 = vector.broadcast %c0_i32 : i32 to vector<3x16xi32>
    %11 = arith.cmpi eq, %3, %10 : vector<3x16xi32>
    %cst = arith.constant 0.000000e+00 : f32
    %12 = vector.shape_cast %9 : vector<3x1xf32> to vector<3x1xf32>
    %13 = vector.broadcast %12 : vector<3x1xf32> to vector<3x16xf32>
    %14 = vector.broadcast %cst : f32 to vector<3x16xf32>
    %15 = arith.select %11, %13, %14 : vector<3x16xi1>, vector<3x16xf32>
    %cst_2 = arith.constant 1.000000e+10 : f32
    %16 = vector.broadcast %cst_2 : f32 to vector<1x128xf32>
    %c-128_i32 = arith.constant -128 : i32
    %c1_i32 = arith.constant 1 : i32
    %c15_i32 = arith.constant 15 : i32
    %17 = arith.addi %c1_i32, %c15_i32 : i32
    %c1_i32_3 = arith.constant 1 : i32
    %18:3 = scf.for %arg3 = %c1_i32 to %17 step %c1_i32_3 iter_args(%arg4 = %16, %arg5 = %9, %arg6 = %15) -> (vector<1x128xf32>, vector<3x1xf32>, vector<3x16xf32>)  : i32 {
      %22 = vector.extract_strided_slice %arg5 {offsets = [0, 0], sizes = [1, 1], strides = [1, 1]} : vector<3x1xf32> to vector<1x1xf32>
      %23 = vector.broadcast %22 : vector<1x1xf32> to vector<1x128xf32>
      %24 = arith.subf %6, %23 : vector<1x128xf32>
      %25 = vector.extract_strided_slice %arg5 {offsets = [1, 0], sizes = [1, 1], strides = [1, 1]} : vector<3x1xf32> to vector<1x1xf32>
      %26 = vector.broadcast %25 : vector<1x1xf32> to vector<1x128xf32>
      %27 = arith.subf %7, %26 : vector<1x128xf32>
      %28 = vector.extract_strided_slice %arg5 {offsets = [2, 0], sizes = [1, 1], strides = [1, 1]} : vector<3x1xf32> to vector<1x1xf32>
      %29 = vector.broadcast %28 : vector<1x1xf32> to vector<1x128xf32>
      %30 = arith.subf %8, %29 : vector<1x128xf32>
      %31 = arith.mulf %24, %24 : vector<1x128xf32>
      %32 = arith.mulf %27, %27 : vector<1x128xf32>
      %33 = arith.addf %31, %32 : vector<1x128xf32>
      %34 = arith.mulf %30, %30 : vector<1x128xf32>
      %35 = arith.addf %33, %34 : vector<1x128xf32>
      %36 = arith.minimumf %arg4, %35 : vector<1x128xf32>
      %37 = tpu.bitcast %36 : vector<1x128xf32> -> vector<1x128xi32>
      %38 = vector.broadcast %c-128_i32 : i32 to vector<1x128xi32>
      %39 = arith.andi %37, %38 : vector<1x128xi32>
      %40 = arith.ori %39, %5 : vector<1x128xi32>
      %41 = vector.shape_cast %40 : vector<1x128xi32> to vector<1x1x128xi32>
      %cst_8 = arith.constant dense<-2147483648> : vector<1xi32>
      %42 = vector.multi_reduction <maxsi>, %41, %cst_8 [1, 2] : vector<1x1x128xi32> to vector<1xi32>
      %43 = vector.shape_cast %42 : vector<1xi32> to vector<1x1x1xi32>
      %44 = vector.extract %43[0, 0, 0] : i32 from vector<1x1x1xi32>
      %c127_i32_9 = arith.constant 127 : i32
      %45 = arith.andi %44, %c127_i32_9 : i32
      %c127_i32_10 = arith.constant 127 : i32
      %46 = arith.subi %c127_i32_10, %45 : i32
      %47 = vector.broadcast %46 : i32 to vector<1x128xi32>
      %48 = arith.cmpi eq, %2, %47 : vector<1x128xi32>
      %cst_11 = arith.constant 0.000000e+00 : f32
      %49 = vector.shape_cast %48 : vector<1x128xi1> to vector<1x128xi1>
      %50 = vector.broadcast %49 : vector<1x128xi1> to vector<3x128xi1>
      %51 = vector.broadcast %cst_11 : f32 to vector<3x128xf32>
      %52 = arith.select %50, %1, %51 : vector<3x128xi1>, vector<3x128xf32>
      %cst_12 = arith.constant dense<0.000000e+00> : vector<3xf32>
      %53 = vector.multi_reduction <add>, %52, %cst_12 [1] : vector<3x128xf32> to vector<3xf32>
      %54 = vector.shape_cast %53 : vector<3xf32> to vector<3x1xf32>
      %55 = vector.broadcast %arg3 : i32 to vector<3x16xi32>
      %56 = arith.cmpi eq, %3, %55 : vector<3x16xi32>
      %57 = vector.shape_cast %54 : vector<3x1xf32> to vector<3x1xf32>
      %58 = vector.broadcast %57 : vector<3x1xf32> to vector<3x16xf32>
      %59 = arith.select %56, %58, %arg6 : vector<3x16xi1>, vector<3x16xf32>
      scf.yield %36, %54, %59 : vector<1x128xf32>, vector<3x1xf32>, vector<3x16xf32>
    }
    %c15_i32_4 = arith.constant 15 : i32
    %c0_5 = arith.constant 0 : index
    %c0_6 = arith.constant 0 : index
    %c0_7 = arith.constant 0 : index
    %19 = vector.load %arg2[%c0_5, %c0_6, %c0_7] : memref<1x3x16xf32, #tpu.memory_space<vmem>>, vector<1x3x16xf32>
    %20 = vector.shape_cast %19 : vector<1x3x16xf32> to vector<3x16xf32>
    %21 = vector.shape_cast %18#2 : vector<3x16xf32> to vector<1x3x16xf32>
    tpu.vector_store %arg2[%c0_5, %c0_6, %c0_7], %21 {strides = array<i32>} : memref<1x3x16xf32, #tpu.memory_space<vmem>>, vector<1x3x16xf32>,
    return
  }
  func.func @transform_0(%arg0: i32) -> (i32, i32, i32) {
    %c0_i32 = arith.constant 0 : i32
    %c0_i32_0 = arith.constant 0 : i32
    %c0_i32_1 = arith.constant 0 : i32
    return %arg0, %c0_i32, %c0_i32_0 : i32, i32, i32
  }
  func.func @transform_1(%arg0: i32) -> (i32, i32, i32) {
    %c0_i32 = arith.constant 0 : i32
    %c0_i32_0 = arith.constant 0 : i32
    %c0_i32_1 = arith.constant 0 : i32
    return %arg0, %c0_i32, %c0_i32_0 : i32, i32, i32
  }
}

</mosaic_0001>

<llo_original>
// kernel: tpu_custom_call.1
$region0: #{tpu_custom_call.1}
  #allocation0 [shape = 'u32[]', space=smem, size = 0x4, offset = 0x4, fixed_abs, tag = 'smem constant byte address 0x4 - core index']
  #allocation1 [shape = 'u32[72,128]{1,0:T(1,128)}', space=vmem, size = 0x9000, scoped, tag = 'internal scratch']
  %s0 = inlined_call_operand.vmem [shape: f32[2,3,128], index: 0, kind: input, shape index: {}]
  %s1 = inlined_call_operand.vmem [shape: f32[2,3,16], index: 1, kind: output, shape index: {}]
  %s2 = sld [smem:[#allocation0]]
  $region44: #{tpu_custom_call.1} parent=0
    _
  %s4 = ssub.s32 1, %s2
  %s5 = scalar_select 0, %s4, %s2
  loop: start=0, step=1, limit=4
  $region2: #{tpu_custom_call.1} parent=0 // loop_pre_header
    _
  $region3: #{tpu_custom_call.1} parent=0 // loop_header
    %s7 = sphi 0, %s11
    %p8 = scmp.ge.s32.totalorder %s7, 4
    %s17 = sphi 0, %s19
    %s20 = sphi 0, %s17
    %s21 = sphi 0, %s20
    %s37 = sphi 0, %s21
    %s43 = sphi 0, %s45
    %s46 = sphi 0, %s43
    %s47 = sphi 0, %s46
    %s63 = sphi 0, %s47
  $region4: #{tpu_custom_call.1} parent=0 // loop_header_branch
    %10 = sbr.rel (%p8) target = $region8
  $region5: #{tpu_custom_call.1} parent=0 // loop_body
    %s12 = ssub.s32 %s7, 1
    %s13 = ssub.s32 %s7, 2
    %s14 = sadd.s32 %s7, 1
    %s15 = ssub.s32 %s7, %s14
    %p16 = scmp.eq.s32.totalorder %s15, 0
    %s18 = sadd.s32 %s17, 1
    %s19 = scalar_select %p16, %s17, %s18
    %p22 = pneg %p16
    %p23 = scmp.eq.s32.totalorder %s7, 1
    %p24 = por %p22, %p23
    %p25 = scmp.ne.s32.totalorder %s17, %s20
    %p26 = scmp.eq.s32.totalorder %s7, 0
    %p27 = por %p25, %p26
    %p28 = scmp.ne.s32.totalorder %s17, %s20
    %p29 = scmp.eq.s32.totalorder %s12, 1
    %p30 = por %p28, %p29
    %p31 = scmp.ne.s32.totalorder %s20, %s21
    %p32 = scmp.eq.s32.totalorder %s12, 0
    %p33 = por %p31, %p32
    %p34 = scmp.ne.s32.totalorder %s20, %s21
    %p35 = scmp.eq.s32.totalorder %s13, 1
    %p36 = por %p34, %p35
    %p38 = scmp.ne.s32.totalorder %s21, %s37
    %p39 = scmp.eq.s32.totalorder %s13, 0
    %p40 = por %p38, %p39
    %s41 = ssub.s32 %s7, %s14
    %p42 = scmp.eq.s32.totalorder %s41, 0
    %s44 = sadd.s32 %s43, 1
    %s45 = scalar_select %p42, %s43, %s44
    %p48 = pneg %p42
    %p49 = scmp.eq.s32.totalorder %s7, 1
    %p50 = por %p48, %p49
    %p51 = scmp.ne.s32.totalorder %s43, %s46
    %p52 = scmp.eq.s32.totalorder %s7, 0
    %p53 = por %p51, %p52
    %p54 = scmp.ne.s32.totalorder %s43, %s46
    %p55 = scmp.eq.s32.totalorder %s12, 1
    %p56 = por %p54, %p55
    %p57 = scmp.ne.s32.totalorder %s46, %s47
    %p58 = scmp.eq.s32.totalorder %s12, 0
    %p59 = por %p57, %p58
    %p60 = scmp.ne.s32.totalorder %s46, %s47
    %p61 = scmp.eq.s32.totalorder %s13, 1
    %p62 = por %p60, %p61
    %p64 = scmp.ne.s32.totalorder %s47, %s63
    %p65 = scmp.eq.s32.totalorder %s13, 0
    %p66 = por %p64, %p65
    %p67 = scmp.le.s32.totalorder 1, %s7
    %p68 = scmp.lt.s32.totalorder %s7, 3
    %p69 = pnand %p67, %p68
    %p70 = pneg %p69
    // Predicated region
    $region9: #{tpu_custom_call.1} parent=5 // pred_check
      _
    $region10: #{tpu_custom_call.1} parent=5 // pred_check_branch
      %72 = sbr.rel (%p69) target = $region12
    $region11: #{tpu_custom_call.1} parent=5 // pred_region
      %s73 = ssub.s32 %s7, 1
    $region12: #{tpu_custom_call.1} parent=5 // pred_fallthru
      _
    %p74 = scmp.lt.s32.totalorder %s7, 2
    // Predicated region
    $region13: #{tpu_custom_call.1} parent=5 // pred_check
      %p75 = pneg %p74
    $region14: #{tpu_custom_call.1} parent=5 // pred_check_branch
      %77 = sbr.rel (%p75) target = $region16
    $region15: #{tpu_custom_call.1} parent=5 // pred_region
      // Predicated region
      $region17: #{tpu_custom_call.1} parent=15 // pred_check
        %p78 = pneg %p27
      $region18: #{tpu_custom_call.1} parent=15 // pred_check_branch
        %80 = sbr.rel (%p78) target = $region20
      $region19: #{tpu_custom_call.1} parent=15 // pred_region
        %p81 = scmp.lt.s32.totalorder %s7, 1
        %s82 = scalar_select %p81, %s7, 1
        %s83 = smul.addr %s82, 4
        %s84 = scalar_lea.vmem %s0, %s83
      $region20: #{tpu_custom_call.1} parent=15 // pred_fallthru
        _
    $region16: #{tpu_custom_call.1} parent=5 // pred_fallthru
      _
    %p85 = scmp.le.s32.totalorder 1, %s7
    %p86 = scmp.lt.s32.totalorder %s7, 3
    %p87 = pnand %p85, %p86
    %p88 = pneg %p87
    // Predicated region
    $region21: #{tpu_custom_call.1} parent=5 // pred_check
      _
    $region22: #{tpu_custom_call.1} parent=5 // pred_check_branch
      %90 = sbr.rel (%p87) target = $region24
    $region23: #{tpu_custom_call.1} parent=5 // pred_region
      %s91 = ssub.s32 %s7, 1
      %p92 = scmp.lt.s32.totalorder %s12, 1
      %s93 = scalar_select %p92, %s12, 1
      %s94 = smul.addr %s93, 4
      %s95 = scalar_lea.vmem %s0, %s94
      %p96 = pneg %p33
      %p97 = pneg %p30
      %p98 = pneg %p59
      %p99 = pneg %p56
      %p100 = scmp.lt.s32.totalorder %s12, 1
      %s101 = scalar_select %p100, %s12, 1
      %s102 = smul.addr %s101, 4
      %s103 = scalar_lea.vmem %s1, %s102
      %p104 = scmp.lt.s32.totalorder %s12, 1
      %s105 = scalar_select %p104, %s12, 1
      %s106 = smul.addr %s105, 4
      %s107 = scalar_lea.vmem %s0, %s106
      %p108 = scmp.lt.s32.totalorder %s12, 1
      %s109 = scalar_select %p108, %s12, 1
      %s110 = smul.addr %s109, 4
      %s111 = scalar_lea.vmem %s1, %s110
      %v112 = vld [vmem:[%s107] sm:$0x7]
      %v113 = vlaneseq
      %v114 = vand.u32 %v113, 127
      %v115 = vsub.s32 127, %v114
      %vm116 = vcmp.eq.s32.totalorder %v114, 0
      %118 = vset.pattern.permute.xlu0 0
      %119 = vperm.xlu0 %118, %v112
      %v120 = vpop.permute.xlu0 %119
      %v122 = vsel %vm116, %v120, 0.0
      loop: start=1, step=1, limit=16
      $region25: #{tpu_custom_call.1} parent=23 // loop_pre_header
        _
      $region26: #{tpu_custom_call.1} parent=23 // loop_header
        %s124 = sphi 1, %s128
        %p125 = scmp.ge.s32.totalorder %s124, 16
        %v129 = vphi 1e+10, %v146
        %v130 = vphi %v112, %v186
        %v131 = vphi %v122, %v189
      $region27: #{tpu_custom_call.1} parent=23 // loop_header_branch
        %127 = sbr.rel (%p125) target = $region31
      $region28: #{tpu_custom_call.1} parent=23 // loop_body
        %133 = vset.pattern.permute.xlu0 0
        %134 = vperm.xlu0 %133, %v130
        %v135 = vpop.permute.xlu0 %134
        %v137 = vsub.f32 %v112, %v135
        %v138 = vmul.f32 %v137, %v137
        %v140 = vrot.slane %v138, 1
        %v142 = vadd.f32 %v138, %v140
        %v143 = vrot.slane %v138, 2
        %v145 = vadd.f32 %v142, %v143
        %v146 = vmin.f32 %v129, %v145
        %v148 = vand.u32 %v146, 4294967168
        %v149 = vor.u32 %v148, %v115
        %vm150 = vcmask 1040384
        %v151 = vsel %vm150, %v149, 2147483648
        %v152 = vand.u32 %v151, 65535
        %v153 = vshra.s32 %v151, 16
        %v154 = vcvt.s32.f32 %v152
        %v155 = vcvt.s32.f32 %v153
        %156 = vmax.xlane.f32.xlu0 %v155
        %v157 = vpop.xlane.xlu0 %156
        %vm158 = vcmp.eq.f32.partialorder %v155, %v157
        %v159 = vsel %vm158, %v154, -inf
        %160 = vmax.xlane.f32.xlu0 %v159
        %v161 = vpop.xlane.xlu0 %160
        %v162 = vcvt.f32.s32 %v161
        %v163 = vcvt.f32.s32 %v157
        %v164 = vshll.u32 %v163, 16
        %v165 = vadd.s32 %v164, %v162
        %v166 = vrot.slane %v165, 4
        %vm167 = vcmp.gt.s32.totalorder %v165, %v166
        %v168 = vsel %vm167, %v165, %v166
        %v169 = vrot.slane %v168, 2
        %vm170 = vcmp.gt.s32.totalorder %v168, %v169
        %v171 = vsel %vm170, %v168, %v169
        %v172 = vrot.slane %v171, 1
        %vm173 = vcmp.gt.s32.totalorder %v171, %v172
        %v174 = vsel %vm173, %v171, %v172
        %s175 = vtos %v174
        %s176 = sand.u32 %s175, 127
        %s177 = ssub.s32 127, %s176
        %v178 = vstv %s177
        %vm179 = vcmp.eq.s32.totalorder %v114, %v178
        %v180 = vsel %vm179, 1, 0
        %vm181 = vcmp.eq.s32.totalorder %v180, 1
        %v182 = vsel %vm181, %v112, 0.0
        %vm183 = vcmask 1042432
        %v184 = vsel %vm183, %v182, 0.0
        %185 = vadd.xlane.f32.xlu0 %v184
        %v186 = vpop.xlane.xlu0 %185
        %v187 = vstv %s124
        %vm188 = vcmp.eq.s32.totalorder %v114, %v187
        %v189 = vsel %vm188, %v186, %v131
      $region29: #{tpu_custom_call.1} parent=23 // loop_footer
        %s128 = sadd.s32 1, %s124
      $region30: #{tpu_custom_call.1} parent=23 // loop_footer_branch
        %123 = sbr.rel target = $region26
      $region31: #{tpu_custom_call.1} parent=23 // loop_exit
        _
      %vm190 = vcmask 124928
      %191 = vst.msk [vmem:[%s111] sm:$0x7] %vm190, %v131
      %p192 = scmp.lt.s32.totalorder %s12, 1
      %s193 = scalar_select %p192, %s12, 1
      %s194 = smul.addr %s193, 4
      %s195 = scalar_lea.vmem %s1, %s194
      // Predicated region
      $region32: #{tpu_custom_call.1} parent=23 // pred_check
        %p196 = pneg %p56
      $region33: #{tpu_custom_call.1} parent=23 // pred_check_branch
        %198 = sbr.rel (%p196) target = $region35
      $region34: #{tpu_custom_call.1} parent=23 // pred_region
        _
      $region35: #{tpu_custom_call.1} parent=23 // pred_fallthru
        _
    $region24: #{tpu_custom_call.1} parent=5 // pred_fallthru
      _
    %p199 = scmp.le.s32.totalorder 2, %s7
    // Predicated region
    $region36: #{tpu_custom_call.1} parent=5 // pred_check
      %p200 = pneg %p199
    $region37: #{tpu_custom_call.1} parent=5 // pred_check_branch
      %202 = sbr.rel (%p200) target = $region39
    $region38: #{tpu_custom_call.1} parent=5 // pred_region
      %s203 = ssub.s32 %s7, 2
      // Predicated region
      $region40: #{tpu_custom_call.1} parent=38 // pred_check
        %p204 = pneg %p62
      $region41: #{tpu_custom_call.1} parent=38 // pred_check_branch
        %206 = sbr.rel (%p204) target = $region43
      $region42: #{tpu_custom_call.1} parent=38 // pred_region
        %p207 = scmp.lt.s32.totalorder %s13, 1
        %s208 = scalar_select %p207, %s13, 1
        %s209 = smul.addr %s208, 4
        %s210 = scalar_lea.vmem %s1, %s209
      $region43: #{tpu_custom_call.1} parent=38 // pred_fallthru
        _
    $region39: #{tpu_custom_call.1} parent=5 // pred_fallthru
      _
  $region6: #{tpu_custom_call.1} parent=0 // loop_footer
    %s11 = sadd.s32 1, %s7
  $region7: #{tpu_custom_call.1} parent=0 // loop_footer_branch
    %6 = sbr.rel target = $region3
  $region8: #{tpu_custom_call.1} parent=0 // loop_exit
    _

</llo_original>
